<compile_context>
chip_gen: v7x
topology: tpu7x:2x2x1
jax: 0.10.0
libtpu: 0.0.40
codegen_flags: <defaults>
</compile_context>

<pallas_src>
import jax
import jax.numpy as jnp
from jax.experimental import pallas as pl
from jax.experimental.pallas import tpu as pltpu


def _round_up(x, m):
    return ((x + m - 1) // m) * m


def pg_context_kernel(ctx_ref, w_ref, o_ref):
    # ctx_ref: (TB, 2D+1), w_ref: (2D+1, D), o_ref: (TB, D)
    o_ref[...] = jnp.dot(
        ctx_ref[...], w_ref[...], preferred_element_type=jnp.float32
    ).astype(o_ref.dtype)


def prepare_pg_context_weight(weight):
    """Hoisted per-rollout weight re-layout.

    weight: [D, 2*D+1] float32  (torch nn.Linear layout [out_features, in_features])
    returns W^T contiguous: [2*D+1, D]. Call ONCE per rollout, not per decode step.
    """
    return jnp.asarray(weight).T


def pg_context_forward(embeddings, current_node, tour_time, w_ctx, *, tb=None):
    """pgContext forward.

    embeddings:   [B, N, D] float32
    current_node: [B] int32
    tour_time:    [B] float32
    w_ctx:        [2*D+1, D] float32  (pre-transposed weight, see prepare_pg_context_weight)
    returns:      [B, D] float32
    """
    B, N, D = embeddings.shape
    K = 2 * D + 1
    assert w_ctx.shape == (K, D)

    # Glue (plain JAX, fuses with the concat below): the two gathers.
    # NOTE: jnp.take_along_axis clamps OOB indices where torch.gather would error.
    depot_emb = embeddings[:, 1, :]                                           # [B, D]
    cur_emb = jnp.take_along_axis(
        embeddings, current_node.astype(jnp.int32)[:, None, None], axis=1
    )[:, 0, :]                                                                # [B, D]
    ctx = jnp.concatenate(
        [depot_emb, cur_emb, tour_time.reshape(B, 1).astype(embeddings.dtype)], axis=-1
    )                                                                         # [B, 2D+1]

    # Batch tiling: capped tile (multiple of 8 sublanes), grid over the batch,
    # pad the tail tile so pl.cdiv never drops remainder rows.
    if tb is None:
        tb = min(1024, _round_up(B, 8))
    tb = max(8, _round_up(tb, 8))
    num_tiles = pl.cdiv(B, tb)
    Bp = num_tiles * tb
    if Bp != B:
        ctx = jnp.pad(ctx, ((0, Bp - B), (0, 0)))

    out = pl.pallas_call(
        pg_context_kernel,
        out_shape=jax.ShapeDtypeStruct((Bp, D), embeddings.dtype),
        grid_spec=pltpu.PrefetchScalarGridSpec(
            num_scalar_prefetch=0,
            grid=(num_tiles,),
            in_specs=[
                pl.BlockSpec((tb, K), lambda i: (i, 0)),   # [depot | cur | tt] batch tile
                pl.BlockSpec((K, D), lambda i: (0, 0)),    # W^T, resident across tiles
            ],
            out_specs=pl.BlockSpec((tb, D), lambda i: (i, 0)),
        ),
        compiler_params=pltpu.CompilerParams(
            dimension_semantics=("parallel",),
            vmem_limit_bytes=64 << 20,
        ),
    )(ctx, w_ctx)

    return out[:B] if Bp != B else out


if __name__ == "__main__":
    key = jax.random.PRNGKey(0)
    B, N, D = 8, 10, 32           # batch, num_nodes, embedding_dim
    step_context_dim = 2 * D + 1  # pgContext: depot + current node + tour_time

    k1, k2, k3, k4 = jax.random.split(key, 4)
    embeddings = jax.random.normal(k1, (B, N, D), dtype=jnp.float32)
    current_node = jax.random.randint(k2, (B,), 0, N, dtype=jnp.int32)
    tour_time = jax.random.uniform(k3, (B,), dtype=jnp.float32)

    # Deterministic nn.Linear-style init (uniform(-1/sqrt(in), 1/sqrt(in)), bias=False).
    bound = 1.0 / (step_context_dim ** 0.5)
    weight = jax.random.uniform(
        k4, (D, step_context_dim), minval=-bound, maxval=bound, dtype=jnp.float32
    )

    # One-time (per-rollout) weight re-layout, hoisted out of the per-step path.
    w_ctx = prepare_pg_context_weight(weight)
    w_ctx = jax.block_until_ready(w_ctx)

    out = pg_context_forward(embeddings, current_node, tour_time, w_ctx)
    out = jax.block_until_ready(out)

    # Pure-JAX reference of the exact PyTorch forward.
    depot_ref = embeddings[:, 1, :]
    cur_ref = jnp.take_along_axis(embeddings, current_node[:, None, None], axis=1)[:, 0, :]
    ctx_ref = jnp.concatenate([depot_ref, cur_ref, tour_time[:, None]], axis=-1)
    ref = ctx_ref @ weight.T

    assert out.shape == (B, D)
    assert jnp.allclose(out, ref, atol=1e-5, rtol=1e-5), "mismatch vs reference"
    print("KERNEL_OK")
</pallas_src>

<mosaic_0001>
module attributes {stable_mosaic.version = 11 : i64} {
  func.func @pg_context_kernel(%arg0: i32, %arg1: memref<8x65xf32, #tpu.memory_space<vmem>>, %arg2: memref<65x32xf32, #tpu.memory_space<vmem>>, %arg3: memref<8x32xf32, #tpu.memory_space<vmem>>) attributes {dimension_semantics = [#tpu.dimension_semantics<parallel>], iteration_bounds = array<i64: 1>, scalar_prefetch = 0 : i64, scratch_operands = 0 : i64, tpu.core_type = #tpu.core_type<tc>, window_params = [{transform_indices = @transform_0, window_bounds = array<i64: 8, 65>}, {pipeline_mode = #tpu.pipeline_mode<synchronous>, transform_indices = @transform_1, window_bounds = array<i64: 65, 32>}, {transform_indices = @transform_2, window_bounds = array<i64: 8, 32>}]} {
    %c0 = arith.constant 0 : index
    %c0_0 = arith.constant 0 : index
    %0 = vector.load %arg1[%c0, %c0_0] : memref<8x65xf32, #tpu.memory_space<vmem>>, vector<8x65xf32>
    %c0_1 = arith.constant 0 : index
    %c0_2 = arith.constant 0 : index
    %1 = vector.load %arg2[%c0_1, %c0_2] : memref<65x32xf32, #tpu.memory_space<vmem>>, vector<65x32xf32>
    %cst = arith.constant dense<0.000000e+00> : vector<8x32xf32>
    %2 = tpu.matmul %0, %1, %cst {dimension_numbers = #tpu.dot_dimension_numbers<[1], [0], [0], [1], [0, 0, 1, 1], [], []>} : vector<8x65xf32>, vector<65x32xf32>, vector<8x32xf32> -> vector<8x32xf32>
    %c0_3 = arith.constant 0 : index
    %c0_4 = arith.constant 0 : index
    %3 = vector.load %arg3[%c0_3, %c0_4] : memref<8x32xf32, #tpu.memory_space<vmem>>, vector<8x32xf32>
    tpu.vector_store %arg3[%c0_3, %c0_4], %2 {strides = array<i32>} : memref<8x32xf32, #tpu.memory_space<vmem>>, vector<8x32xf32>,
    return
  }
  func.func @transform_0(%arg0: i32) -> (i32, i32) {
    %c0_i32 = arith.constant 0 : i32
    %c0_i32_0 = arith.constant 0 : i32
    return %arg0, %c0_i32 : i32, i32
  }
  func.func @transform_1(%arg0: i32) -> (i32, i32) {
    %c0_i32 = arith.constant 0 : i32
    %c0_i32_0 = arith.constant 0 : i32
    %c0_i32_1 = arith.constant 0 : i32
    return %c0_i32, %c0_i32_0 : i32, i32
  }
  func.func @transform_2(%arg0: i32) -> (i32, i32) {
    %c0_i32 = arith.constant 0 : i32
    %c0_i32_0 = arith.constant 0 : i32
    return %arg0, %c0_i32 : i32, i32
  }
}

</mosaic_0001>

<llo_original>
// kernel: tpu_custom_call.1
$region0: #{tpu_custom_call.1}
  #allocation0 [shape = 'u32[]', space=smem, size = 0x4, offset = 0x4, fixed_abs, tag = 'smem constant byte address 0x4 - core index']
  #allocation1 [shape = 'u32[144,128]{1,0:T(1,128)}', space=vmem, size = 0x12000, scoped, tag = 'internal scratch']
  %s0 = inlined_call_operand.hbm [shape: f32[8,65], index: 0, kind: input, shape index: {}]
  %s1 = inlined_call_operand.hbm [shape: f32[65,32], index: 1, kind: input, shape index: {}]
  %s2 = inlined_call_operand.hbm [shape: f32[8,32], index: 2, kind: output, shape index: {}]
  %s3 = sld [smem:[#allocation0]]
  $region26: #{tpu_custom_call.1} parent=0
    _
  %s5 = ssub.s32 1, %s3
  %s6 = scalar_select 0, %s5, %s3
  $region1: #{tpu_custom_call.1} parent=0
    #allocation2 [shape = 'u8[4096]{0}', space=vmem, size = 0x1000, scoped, tag = 'input window, operand 0, single buffered']
    #allocation3 [shape = 's32[1]{0}', space=sflag, size = 0x4, scoped, tag = 'scoped memory for tpu_custom_call.1']
    #allocation4 [shape = 's32[1]{0}', space=sflag, size = 0x4, scoped, tag = 'scoped memory for tpu_custom_call.1']
    #allocation5 [shape = 'u8[36864]{0}', space=vmem, size = 0x9000, scoped, tag = 'input window, operand 1, single buffered']
    #allocation6 [shape = 's32[1]{0}', space=sflag, size = 0x4, scoped, tag = 'scoped memory for tpu_custom_call.1']
    #allocation7 [shape = 'u8[4096]{0}', space=vmem, size = 0x1000, scoped, tag = 'output window, operand 0, single buffered']
    %7 = vsyncpa [#allocation3], 0
    %8 = vsyncpa [#allocation6], 0
    %9 = vsyncpa [#allocation4], 0
    // Predicated region
    $region2: #{tpu_custom_call.1} parent=1 // pred_check
      _
    $region3: #{tpu_custom_call.1} parent=1 // pred_check_branch
      %11 = sbr.rel (0) target = $region5
    $region4: #{tpu_custom_call.1} parent=1 // pred_region
      %s13 = ssub.s32 128, 128
      %14 = vsyncadd [#allocation3], %s13
      %s16 = sshll.u32 [#allocation2], 4
      %s17 = int_to_ptr.vmem [resolvable:$true] %s16
      %19 = dma.hbm_to_vmem [thread:$0]  %s0, 128, %s17, [#allocation3]
    $region5: #{tpu_custom_call.1} parent=1 // pred_fallthru
      _
    // Predicated region
    $region6: #{tpu_custom_call.1} parent=1 // pred_check
      _
    $region7: #{tpu_custom_call.1} parent=1 // pred_check_branch
      %21 = sbr.rel (0) target = $region9
    $region8: #{tpu_custom_call.1} parent=1 // pred_region
      %s23 = ssub.s32 1152, 1152
      %24 = vsyncadd [#allocation6], %s23
      %s25 = sshll.u32 [#allocation5], 4
      %s26 = int_to_ptr.vmem [resolvable:$true] %s25
      %31 = dma.hbm_to_vmem [thread:$0]  %s1, 1152, %s26, [#allocation6], 128, 128, 8
    $region9: #{tpu_custom_call.1} parent=1 // pred_fallthru
      _
    // Predicated region
    $region10: #{tpu_custom_call.1} parent=1 // pred_check
      _
    $region11: #{tpu_custom_call.1} parent=1 // pred_check_branch
      %33 = sbr.rel (0) target = $region13
    $region12: #{tpu_custom_call.1} parent=1 // pred_region
      %34 = dma.done [#allocation3], 128
    $region13: #{tpu_custom_call.1} parent=1 // pred_fallthru
      _
    // Predicated region
    $region14: #{tpu_custom_call.1} parent=1 // pred_check
      _
    $region15: #{tpu_custom_call.1} parent=1 // pred_check_branch
      %36 = sbr.rel (0) target = $region17
    $region16: #{tpu_custom_call.1} parent=1 // pred_region
      %37 = dma.done [#allocation6], 1152
    $region17: #{tpu_custom_call.1} parent=1 // pred_fallthru
      _
    %v38 = vld [vmem:[#allocation2] sm:$0xff]
    %v39 = vld [vmem:[#allocation5] sm:$0xff]
    %v40 = vld [vmem:[#allocation5 + $0x8] sm:$0xff]
    %v41 = vld [vmem:[#allocation5 + $0x10] sm:$0xff]
    %v42 = vld [vmem:[#allocation5 + $0x18] sm:$0xff]
    %v43 = vld [vmem:[#allocation5 + $0x20] sm:$0xff]
    %v44 = vld [vmem:[#allocation5 + $0x28] sm:$0xff]
    %v45 = vld [vmem:[#allocation5 + $0x30] sm:$0xff]
    %v46 = vld [vmem:[#allocation5 + $0x38] sm:$0xff]
    %v47 = vld [vmem:[#allocation5 + $0x40] sm:$0x1]
    %vm48 = vcmask 531456
    %v50 = vsel %vm48, %v38, 0
    %vm52 = vcmask 1040384
    %v54 = vsel %vm52, %v47, 0
    %56 = vmatprep.subr.mxu0 0.0
    %57 = vmatpush1.msra.mxu0 %v39
    %58 = vmatprep.subr.mxu0 0.0
    %59 = vmatpush1.msra.mxu0 %v40
    %60 = vmatprep.subr.mxu0 0.0
    %61 = vmatpush1.msra.mxu0 %v41
    %62 = vmatprep.subr.mxu0 0.0
    %63 = vmatpush1.msra.mxu0 %v42
    %64 = vmatprep.subr.mxu0 0.0
    %65 = vmatpush1.msra.mxu0 %v43
    %66 = vmatprep.subr.mxu0 0.0
    %67 = vmatpush1.msra.mxu0 %v44
    %68 = vmatprep.subr.mxu0 0.0
    %69 = vmatpush1.msra.mxu0 %v45
    %70 = vmatprep.subr.mxu0 0.0
    %71 = vmatpush1.msra.mxu0 %v46
    %72 = vmatprep.subr.mxu0 0.0
    %73 = vmatpush1.msra.mxu0 %v54
    %74 = vmatprep.subr.mxu0 0.0
    %75 = vmatpush1.msra.mxu0 0.0
    %76 = vmatprep.subr.mxu0 0.0
    %77 = vmatpush1.msra.mxu0 0.0
    %78 = vmatprep.subr.mxu0 0.0
    %79 = vmatpush1.msra.mxu0 0.0
    %80 = vmatprep.subr.mxu0 0.0
    %81 = vmatpush1.msra.mxu0 0.0
    %82 = vmatprep.subr.mxu0 0.0
    %83 = vmatpush1.msra.mxu0 0.0
    %84 = vmatprep.subr.mxu0 0.0
    %85 = vmatpush1.msra.mxu0 0.0
    %86 = vmatprep.subr.mxu0 0.0
    %87 = vmatpush1.msra.mxu0 0.0
    %88 = vmatprep.subr.mxu0 0.0
    %89 = vmatpush1.msra.mxu0 0.0
    %90 = vmatprep.subr.mxu0 0.0
    %91 = vmatpush1.msra.mxu0 0.0
    %92 = vmatprep.subr.mxu0 0.0
    %93 = vmatpush1.msra.mxu0 0.0
    %94 = vmatprep.subr.mxu0 0.0
    %95 = vmatpush1.msra.mxu0 0.0
    %96 = vmatprep.subr.mxu0 0.0
    %97 = vmatpush1.msra.mxu0 0.0
    %98 = vmatprep.subr.mxu0 0.0
    %99 = vmatpush1.msra.mxu0 0.0
    %100 = vmatprep.subr.mxu0 0.0
    %101 = vmatpush1.msra.mxu0 0.0
    %102 = vmatprep.subr.mxu0 0.0
    %103 = vmatpush1.msra.mxu0 0.0
    %104 = vmatprep.subr.mxu0 0.0
    %105 = vmatpush1.msra.mxu0 0.0
    %106 = vmatprep.subr.mxu0 0.0
    %107 = vmatpush1.msra.mxu0 0.0
    %108 = vmatprep.subr.mxu0 0.0
    %109 = vmatpush1.msra.mxu0 0.0
    %110 = vmatprep.subr.mxu0 0.0
    %111 = vmatpush1.msra.mxu0 0.0
    %112 = vmatprep.subr.mxu0 0.0
    %113 = vmatpush1.msra.mxu0 0.0
    %114 = vmatprep.subr.mxu0 0.0
    %115 = vmatpush1.msra.mxu0 0.0
    %116 = vmatprep.subr.mxu0 0.0
    %117 = vmatpush1.msra.mxu0 0.0
    %118 = vmatprep.subr.mxu0 0.0
    %119 = vmatpush1.msra.mxu0 0.0
    %120 = vmatprep.mubr.f32.mxu0 0.0
    %121 = vmatmul.mubr.f32.gmra.mrb[0].mxu0 %v50
    %v122 = vpop.f32.mrb[0].mxu0
    %v123 = vadd.f32 0.0, %v122
    %v124 = vpop.f32.mrb[0].mxu0
    %125 = vdwg.mxu0
    %vm126 = vcmask 261120
    %127 = vst.msk [vmem:[#allocation7] sm:$0xff] %vm126, %v123
    // Predicated region
    $region18: #{tpu_custom_call.1} parent=1 // pred_check
      _
    $region19: #{tpu_custom_call.1} parent=1 // pred_check_branch
      %129 = sbr.rel (0) target = $region21
    $region20: #{tpu_custom_call.1} parent=1 // pred_region
      %s131 = ssub.s32 128, 128
      %132 = vsyncadd [#allocation4], %s131
      %s134 = sshll.u32 [#allocation7], 4
      %s135 = int_to_ptr.vmem [resolvable:$true] %s134
      %137 = dma.vmem_to_hbm [thread:$0]  %s135, 128, %s2, [#allocation4]
    $region21: #{tpu_custom_call.1} parent=1 // pred_fallthru
      _
    // Predicated region
    $region22: #{tpu_custom_call.1} parent=1 // pred_check
      _
    $region23: #{tpu_custom_call.1} parent=1 // pred_check_branch
      %139 = sbr.rel (0) target = $region25
    $region24: #{tpu_custom_call.1} parent=1 // pred_region
      %140 = dma.done [#allocation4], 128
    $region25: #{tpu_custom_call.1} parent=1 // pred_fallthru
      _
    %141 = vsyncpa [#allocation3], 1
    %142 = vsyncpa [#allocation6], 1
    %143 = vsyncpa [#allocation4], 1

</llo_original>
